<compile_context>
chip_gen: v5e
topology: v5e:2x2
jax: 0.10.0
libtpu: 0.0.40
codegen_flags: <defaults>
</compile_context>

<pallas_src>
import functools
import math

import jax
import jax.numpy as jnp
import numpy as np
from jax import lax
from jax.experimental import pallas as pl
from jax.experimental.pallas import tpu as pltpu


def _choose_q_block(S, score_budget_bytes=8 * 1024 * 1024):
    """Largest 'nice' query tile dividing S, capped so (Tq, S) f32 stays small."""
    best = S
    for t in (512, 256, 128, 64, 32, 16, 8):
        if t <= S and S % t == 0:
            best = t
            break
    while best > 8 and best % 2 == 0 and best * S * 4 > score_budget_bytes:
        best //= 2
    return best


def _pick_vmem_limit():
    """~100 MiB on 128-MiB parts (v5e/v6e); capacity - 16 MiB headroom on v7x."""
    try:
        cap = int(pltpu.get_tpu_info().vmem_capacity_bytes)
        return int(min(cap - 16 * 1024 * 1024, 100 * 1024 * 1024))
    except Exception:
        return 64 * 1024 * 1024


def _mha_kernel(x_ref, wq_ref, wk_ref, wv_ref, wo_ref,
                bq_ref, bk_ref, bv_ref, bo_ref,
                o_ref,
                k_cache, v_cache, attn_cat,
                *, num_heads, head_dim, q_block, seq_len):
    """One grid step = (batch b, query block qi).

    Blocks (weights/biases are resident across the whole grid):
      x_ref            : (1, S, D)  bf16 rows of batch b (resident across qi)
      wq/wk/wv/wo_ref  : (D, D)     bf16 projection weights (wq pre-scaled)
      bq/bk/bv/bo_ref  : (1, D)     f32 biases (bq pre-scaled)
      o_ref            : (1, Tq, D) output rows of this query block
    Scratch:
      k_cache, v_cache : (S, D) bf16 — K/V of batch b, computed once at qi == 0
      attn_cat         : (Tq, D) bf16 — head h's attention output lives in
                         static lane columns [h*hd, (h+1)*hd)
    """
    H, hd, Tq, S = num_heads, head_dim, q_block, seq_len
    qi = pl.program_id(1)
    q_start = pl.multiple_of(qi * Tq, Tq)

    # K / V for the whole sequence of this batch row: two full-width
    # (S, D) @ (D, D) MXU matmuls, cached in VMEM, reused by every query block.
    @pl.when(qi == 0)
    def _():
        x_all = x_ref[0]                                                # (S, D) bf16
        k_cache[...] = (jnp.dot(x_all, wk_ref[...],
                                preferred_element_type=jnp.float32)
                        + bk_ref[...]).astype(jnp.bfloat16)
        v_cache[...] = (jnp.dot(x_all, wv_ref[...],
                                preferred_element_type=jnp.float32)
                        + bv_ref[...]).astype(jnp.bfloat16)

    # Q for this query block only; softmax scale already folded into wq / bq.
    x_q = x_ref[0, pl.ds(q_start, Tq), :]                               # (Tq, D) bf16
    q_all = (jnp.dot(x_q, wq_ref[...], preferred_element_type=jnp.float32)
             + bq_ref[...]).astype(jnp.bfloat16)                        # (Tq, D)

    # Causal mask built in-kernel: two iota compares, no (S, S) HBM input.
    row = q_start + lax.broadcasted_iota(jnp.int32, (Tq, S), 0)
    col = lax.broadcasted_iota(jnp.int32, (Tq, S), 1)
    causal = col > row                                                  # (Tq, S) bool
    neg = jnp.float32(-1e30)

    # Static head loop: lane-static slices of the full-width projections; each
    # head's (Tq, hd) result lands in its static lane slice of the bf16 concat.
    for h in range(H):
        lo, hi = h * hd, (h + 1) * hd
        q_h = q_all[:, lo:hi]                                           # (Tq, hd)
        k_h = k_cache[:, lo:hi]                                         # (S, hd)
        v_h = v_cache[:, lo:hi]                                         # (S, hd)

        s = lax.dot_general(q_h, k_h, (((1,), (1,)), ((), ())),
                            preferred_element_type=jnp.float32)         # (Tq, S)
        s = jnp.where(causal, neg, s)

        # Numerically stable softmax in f32; reciprocal on the EUP.
        m = jnp.max(s, axis=-1, keepdims=True)
        e = jnp.exp(s - m)
        l = jnp.sum(e, axis=-1, keepdims=True)
        p = (e * pl.reciprocal(l, approx=True)).astype(jnp.bfloat16)    # (Tq, S)

        attn_cat[:, lo:hi] = jnp.dot(
            p, v_h, preferred_element_type=jnp.float32).astype(jnp.bfloat16)

    # Single full-depth output projection: (Tq, D) @ (D, D) on the MXU.
    out = jnp.dot(attn_cat[...], wo_ref[...],
                  preferred_element_type=jnp.float32) + bo_ref[...]
    o_ref[0] = out.astype(o_ref.dtype)


def multi_head_attention(x, params, num_heads):
    """x: (B, S, D) float32. params: wq/bq/wk/bk/wv/bv/wo/bo.
    Weights are (D, D) with layout (in, out); biases are (1, D)."""
    B, S, D = x.shape
    assert D % num_heads == 0, "d_model must be divisible by num_heads"
    H = num_heads
    hd = D // H
    scale = 1.0 / math.sqrt(hd)
    Tq = _choose_q_block(S)
    n_q = S // Tq

    # Fold the softmax scale into the query projection (one-time, host side);
    # cast all matmul operands (x and weights) to bf16 once.
    wq = (params["wq"] * scale).astype(jnp.bfloat16)
    bq = (params["bq"] * scale).astype(jnp.float32)
    wk = params["wk"].astype(jnp.bfloat16)
    wv = params["wv"].astype(jnp.bfloat16)
    wo = params["wo"].astype(jnp.bfloat16)
    bk = params["bk"].astype(jnp.float32)
    bv = params["bv"].astype(jnp.float32)
    bo = params["bo"].astype(jnp.float32)
    x_bf16 = x.astype(jnp.bfloat16)

    kernel = functools.partial(_mha_kernel, num_heads=H, head_dim=hd,
                               q_block=Tq, seq_len=S)

    cost = pl.CostEstimate(
        flops=int(B * (8 * S * D * D + 4 * S * S * D)),
        transcendentals=int(B * H * S * S),
        bytes_accessed=int(2 * B * S * D * 4 + 8 * D * D),
    )

    return pl.pallas_call(
        kernel,
        out_shape=jax.ShapeDtypeStruct((B, S, D), x.dtype),
        grid_spec=pltpu.PrefetchScalarGridSpec(
            num_scalar_prefetch=0,
            grid=(B, n_q),
            in_specs=[
                pl.BlockSpec((1, S, D), lambda b, qi: (b, 0, 0)),   # x (bf16)
                pl.BlockSpec((D, D), lambda b, qi: (0, 0)),          # wq (scaled)
                pl.BlockSpec((D, D), lambda b, qi: (0, 0)),          # wk
                pl.BlockSpec((D, D), lambda b, qi: (0, 0)),          # wv
                pl.BlockSpec((D, D), lambda b, qi: (0, 0)),          # wo
                pl.BlockSpec((1, D), lambda b, qi: (0, 0)),          # bq (scaled)
                pl.BlockSpec((1, D), lambda b, qi: (0, 0)),          # bk
                pl.BlockSpec((1, D), lambda b, qi: (0, 0)),          # bv
                pl.BlockSpec((1, D), lambda b, qi: (0, 0)),          # bo
            ],
            out_specs=pl.BlockSpec((1, Tq, D), lambda b, qi: (b, qi, 0)),
            scratch_shapes=[
                pltpu.VMEM((S, D), jnp.bfloat16),    # K cache (per batch row)
                pltpu.VMEM((S, D), jnp.bfloat16),    # V cache (per batch row)
                pltpu.VMEM((Tq, D), jnp.bfloat16),   # per-head attn concat
            ],
        ),
        compiler_params=pltpu.CompilerParams(
            dimension_semantics=("parallel", "arbitrary"),
            vmem_limit_bytes=_pick_vmem_limit()),
        cost_estimate=cost,
    )(x_bf16, wq, wk, wv, wo, bq, bk, bv, bo)


def _reference(x, params, num_heads):
    """Pure-JAX f32 reference mirroring the PyTorch forward."""
    B, S, D = x.shape
    hd = D // num_heads
    scale = 1.0 / math.sqrt(hd)

    def lin(t, w, b):
        return t @ w + b[0]

    q = lin(x, params["wq"], params["bq"]).reshape(B, S, num_heads, hd).transpose(0, 2, 1, 3)
    k = lin(x, params["wk"], params["bk"]).reshape(B, S, num_heads, hd).transpose(0, 2, 1, 3)
    v = lin(x, params["wv"], params["bv"]).reshape(B, S, num_heads, hd).transpose(0, 2, 1, 3)
    s = jnp.einsum('bhqd,bhkd->bhqk', q, k) * scale
    mask = jnp.triu(jnp.ones((S, S), dtype=bool), k=1)
    s = jnp.where(mask, -jnp.inf, s)
    w = jax.nn.softmax(s, axis=-1)
    o = jnp.einsum('bhqk,bhkd->bhqd', w, v).transpose(0, 2, 1, 3).reshape(B, S, D)
    return lin(o, params["wo"], params["bo"])


def init_params(key, d_model):
    """Deterministic init mimicking nn.Linear (uniform +/- 1/sqrt(fan_in)).
    Weights stored as (in, out) so the kernel does x @ W."""
    bound = 1.0 / math.sqrt(d_model)
    names = ["wq", "bq", "wk", "bk", "wv", "bv", "wo", "bo"]
    keys = jax.random.split(key, len(names))
    params = {}
    for name, k in zip(names, keys):
        shape = (d_model, d_model) if name.startswith("w") else (1, d_model)
        params[name] = jax.random.uniform(k, shape, jnp.float32, -bound, bound)
    return params


if __name__ == "__main__":
    B, S, d_model, num_heads = 2, 8, 32, 4

    key = jax.random.PRNGKey(0)
    kx, kp = jax.random.split(key)
    x = jax.random.normal(kx, (B, S, d_model), dtype=jnp.float32)
    params = init_params(kp, d_model)

    out = multi_head_attention(x, params, num_heads)
    out = jax.block_until_ready(out)

    ref = _reference(x, params, num_heads)
    # bf16 matmul operands (f32 accumulation) + approx reciprocal => relaxed tol.
    np.testing.assert_allclose(np.asarray(out), np.asarray(ref),
                               rtol=2.5e-2, atol=2.5e-2)

    print("KERNEL_OK")
</pallas_src>

<mosaic_0001>
module attributes {stable_mosaic.version = 11 : i64} {
  func.func @_mha_kernel(%arg0: i32, %arg1: i32, %arg2: memref<1x8x32xbf16, #tpu.memory_space<vmem>>, %arg3: memref<32x32xbf16, #tpu.memory_space<vmem>>, %arg4: memref<32x32xbf16, #tpu.memory_space<vmem>>, %arg5: memref<32x32xbf16, #tpu.memory_space<vmem>>, %arg6: memref<32x32xbf16, #tpu.memory_space<vmem>>, %arg7: memref<1x32xf32, #tpu.memory_space<vmem>>, %arg8: memref<1x32xf32, #tpu.memory_space<vmem>>, %arg9: memref<1x32xf32, #tpu.memory_space<vmem>>, %arg10: memref<1x32xf32, #tpu.memory_space<vmem>>, %arg11: memref<1x8x32xf32, #tpu.memory_space<vmem>>, %arg12: memref<8x32xbf16, #tpu.memory_space<vmem>>, %arg13: memref<8x32xbf16, #tpu.memory_space<vmem>>, %arg14: memref<8x32xbf16, #tpu.memory_space<vmem>>) attributes {dimension_semantics = [#tpu.dimension_semantics<parallel>, #tpu.dimension_semantics<arbitrary>], iteration_bounds = array<i64: 2, 1>, scalar_prefetch = 0 : i64, scratch_operands = 3 : i64, tpu.core_type = #tpu.core_type<tc>, window_params = [{transform_indices = @transform_0, window_bounds = array<i64: 1, 8, 32>}, {pipeline_mode = #tpu.pipeline_mode<synchronous>, transform_indices = @transform_1, window_bounds = array<i64: 32, 32>}, {pipeline_mode = #tpu.pipeline_mode<synchronous>, transform_indices = @transform_2, window_bounds = array<i64: 32, 32>}, {pipeline_mode = #tpu.pipeline_mode<synchronous>, transform_indices = @transform_3, window_bounds = array<i64: 32, 32>}, {pipeline_mode = #tpu.pipeline_mode<synchronous>, transform_indices = @transform_4, window_bounds = array<i64: 32, 32>}, {pipeline_mode = #tpu.pipeline_mode<synchronous>, transform_indices = @transform_5, window_bounds = array<i64: 1, 32>}, {pipeline_mode = #tpu.pipeline_mode<synchronous>, transform_indices = @transform_6, window_bounds = array<i64: 1, 32>}, {pipeline_mode = #tpu.pipeline_mode<synchronous>, transform_indices = @transform_7, window_bounds = array<i64: 1, 32>}, {pipeline_mode = #tpu.pipeline_mode<synchronous>, transform_indices = @transform_8, window_bounds = array<i64: 1, 32>}, {transform_indices = @transform_9, window_bounds = array<i64: 1, 8, 32>}]} {
    %c8_i32 = arith.constant 8 : i32
    %0 = arith.muli %arg1, %c8_i32 : i32
    %1 = tpu.assume_multiple %0, 8 : i32
    %c0_i32 = arith.constant 0 : i32
    %2 = arith.cmpi eq, %arg1, %c0_i32 : i32
    %3 = arith.extui %2 : i1 to i32
    %c0_i32_0 = arith.constant 0 : i32
    %4 = arith.cmpi ne, %3, %c0_i32_0 : i32
    scf.if %4 {
      %c0_57 = arith.constant 0 : index
      %c0_58 = arith.constant 0 : index
      %c0_59 = arith.constant 0 : index
      %108 = vector.load %arg2[%c0_57, %c0_58, %c0_59] : memref<1x8x32xbf16, #tpu.memory_space<vmem>>, vector<1x8x32xbf16>
      %109 = vector.shape_cast %108 : vector<1x8x32xbf16> to vector<8x32xbf16>
      %c0_60 = arith.constant 0 : index
      %c0_61 = arith.constant 0 : index
      %110 = vector.load %arg4[%c0_60, %c0_61] : memref<32x32xbf16, #tpu.memory_space<vmem>>, vector<32x32xbf16>
      %cst_62 = arith.constant dense<0.000000e+00> : vector<8x32xf32>
      %111 = tpu.matmul %109, %110, %cst_62 {dimension_numbers = #tpu.dot_dimension_numbers<[1], [0], [0], [1], [0, 0, 1, 1], [], []>} : vector<8x32xbf16>, vector<32x32xbf16>, vector<8x32xf32> -> vector<8x32xf32>
      %c0_63 = arith.constant 0 : index
      %c0_64 = arith.constant 0 : index
      %112 = vector.load %arg8[%c0_63, %c0_64] : memref<1x32xf32, #tpu.memory_space<vmem>>, vector<1x32xf32>
      %113 = vector.broadcast %112 : vector<1x32xf32> to vector<8x32xf32>
      %114 = arith.addf %111, %113 : vector<8x32xf32>
      %115 = arith.truncf %114 : vector<8x32xf32> to vector<8x32xbf16>
      %c0_65 = arith.constant 0 : index
      %c0_66 = arith.constant 0 : index
      %116 = vector.load %arg12[%c0_65, %c0_66] : memref<8x32xbf16, #tpu.memory_space<vmem>>, vector<8x32xbf16>
      tpu.vector_store %arg12[%c0_65, %c0_66], %115 {strides = array<i32>} : memref<8x32xbf16, #tpu.memory_space<vmem>>, vector<8x32xbf16>,
      %c0_67 = arith.constant 0 : index
      %c0_68 = arith.constant 0 : index
      %117 = vector.load %arg5[%c0_67, %c0_68] : memref<32x32xbf16, #tpu.memory_space<vmem>>, vector<32x32xbf16>
      %cst_69 = arith.constant dense<0.000000e+00> : vector<8x32xf32>
      %118 = tpu.matmul %109, %117, %cst_69 {dimension_numbers = #tpu.dot_dimension_numbers<[1], [0], [0], [1], [0, 0, 1, 1], [], []>} : vector<8x32xbf16>, vector<32x32xbf16>, vector<8x32xf32> -> vector<8x32xf32>
      %c0_70 = arith.constant 0 : index
      %c0_71 = arith.constant 0 : index
      %119 = vector.load %arg9[%c0_70, %c0_71] : memref<1x32xf32, #tpu.memory_space<vmem>>, vector<1x32xf32>
      %120 = vector.broadcast %119 : vector<1x32xf32> to vector<8x32xf32>
      %121 = arith.addf %118, %120 : vector<8x32xf32>
      %122 = arith.truncf %121 : vector<8x32xf32> to vector<8x32xbf16>
      %c0_72 = arith.constant 0 : index
      %c0_73 = arith.constant 0 : index
      %123 = vector.load %arg13[%c0_72, %c0_73] : memref<8x32xbf16, #tpu.memory_space<vmem>>, vector<8x32xbf16>
      tpu.vector_store %arg13[%c0_72, %c0_73], %122 {strides = array<i32>} : memref<8x32xbf16, #tpu.memory_space<vmem>>, vector<8x32xbf16>,
    } else {
    }
    %c0 = arith.constant 0 : index
    %5 = arith.index_cast %1 : i32 to index
    %c0_1 = arith.constant 0 : index
    %6 = vector.load %arg2[%c0, %5, %c0_1] : memref<1x8x32xbf16, #tpu.memory_space<vmem>>, vector<1x8x32xbf16>
    %7 = vector.shape_cast %6 : vector<1x8x32xbf16> to vector<8x32xbf16>
    %c0_2 = arith.constant 0 : index
    %c0_3 = arith.constant 0 : index
    %8 = vector.load %arg3[%c0_2, %c0_3] : memref<32x32xbf16, #tpu.memory_space<vmem>>, vector<32x32xbf16>
    %cst = arith.constant dense<0.000000e+00> : vector<8x32xf32>
    %9 = tpu.matmul %7, %8, %cst {dimension_numbers = #tpu.dot_dimension_numbers<[1], [0], [0], [1], [0, 0, 1, 1], [], []>} : vector<8x32xbf16>, vector<32x32xbf16>, vector<8x32xf32> -> vector<8x32xf32>
    %c0_4 = arith.constant 0 : index
    %c0_5 = arith.constant 0 : index
    %10 = vector.load %arg7[%c0_4, %c0_5] : memref<1x32xf32, #tpu.memory_space<vmem>>, vector<1x32xf32>
    %11 = vector.broadcast %10 : vector<1x32xf32> to vector<8x32xf32>
    %12 = arith.addf %9, %11 : vector<8x32xf32>
    %13 = arith.truncf %12 : vector<8x32xf32> to vector<8x32xbf16>
    %14 = tpu.iota {dimensions = array<i32: 0>} : vector<8x8xi32>
    %15 = vector.broadcast %1 : i32 to vector<8x8xi32>
    %16 = arith.addi %15, %14 : vector<8x8xi32>
    %17 = tpu.iota {dimensions = array<i32: 1>} : vector<8x8xi32>
    %18 = arith.cmpi sgt, %17, %16 : vector<8x8xi32>
    %19 = vector.extract_strided_slice %13 {offsets = [0, 0], sizes = [8, 8], strides = [1, 1]} : vector<8x32xbf16> to vector<8x8xbf16>
    %c0_6 = arith.constant 0 : index
    %c0_7 = arith.constant 0 : index
    %20 = vector.load %arg12[%c0_6, %c0_7] : memref<8x32xbf16, #tpu.memory_space<vmem>>, vector<8x8xbf16>
    %c0_8 = arith.constant 0 : index
    %c0_9 = arith.constant 0 : index
    %21 = vector.load %arg13[%c0_8, %c0_9] : memref<8x32xbf16, #tpu.memory_space<vmem>>, vector<8x8xbf16>
    %cst_10 = arith.constant dense<0.000000e+00> : vector<8x8xf32>
    %22 = tpu.matmul %19, %20, %cst_10 {dimension_numbers = #tpu.dot_dimension_numbers<[1], [1], [0], [0], [0, 0, 1, 0], [], []>} : vector<8x8xbf16>, vector<8x8xbf16>, vector<8x8xf32> -> vector<8x8xf32>
    %cst_11 = arith.constant -1.000000e+30 : f32
    %23 = vector.broadcast %cst_11 : f32 to vector<8x8xf32>
    %24 = arith.select %18, %23, %22 : vector<8x8xi1>, vector<8x8xf32>
    %cst_12 = arith.constant dense<0xFF800000> : vector<8xf32>
    %25 = vector.multi_reduction <maximumf>, %24, %cst_12 [1] : vector<8x8xf32> to vector<8xf32>
    %26 = vector.shape_cast %25 : vector<8xf32> to vector<8x1xf32>
    %27 = vector.broadcast %26 : vector<8x1xf32> to vector<8x8xf32>
    %28 = arith.subf %24, %27 : vector<8x8xf32>
    %29 = math.exp %28 : vector<8x8xf32>
    %cst_13 = arith.constant dense<0.000000e+00> : vector<8xf32>
    %30 = vector.multi_reduction <add>, %29, %cst_13 [1] : vector<8x8xf32> to vector<8xf32>
    %31 = vector.shape_cast %30 : vector<8xf32> to vector<8x1xf32>
    %32 = tpu.reciprocal %31 {approx = true} : vector<8x1xf32> -> vector<8x1xf32>
    %33 = vector.broadcast %32 : vector<8x1xf32> to vector<8x8xf32>
    %34 = arith.mulf %29, %33 : vector<8x8xf32>
    %35 = arith.truncf %34 : vector<8x8xf32> to vector<8x8xbf16>
    %cst_14 = arith.constant dense<0.000000e+00> : vector<8x8xf32>
    %36 = tpu.matmul %35, %21, %cst_14 {dimension_numbers = #tpu.dot_dimension_numbers<[1], [0], [0], [1], [0, 0, 1, 1], [], []>} : vector<8x8xbf16>, vector<8x8xbf16>, vector<8x8xf32> -> vector<8x8xf32>
    %37 = arith.truncf %36 : vector<8x8xf32> to vector<8x8xbf16>
    %c0_15 = arith.constant 0 : index
    %c0_16 = arith.constant 0 : index
    %38 = vector.load %arg14[%c0_15, %c0_16] : memref<8x32xbf16, #tpu.memory_space<vmem>>, vector<8x8xbf16>
    tpu.vector_store %arg14[%c0_15, %c0_16], %37 {strides = array<i32>} : memref<8x32xbf16, #tpu.memory_space<vmem>>, vector<8x8xbf16>,
    %39 = vector.extract_strided_slice %13 {offsets = [0, 8], sizes = [8, 8], strides = [1, 1]} : vector<8x32xbf16> to vector<8x8xbf16>
    %c0_17 = arith.constant 0 : index
    %c8 = arith.constant 8 : index
    %40 = vector.load %arg12[%c0_17, %c8] : memref<8x32xbf16, #tpu.memory_space<vmem>>, vector<8x8xbf16>
    %c0_18 = arith.constant 0 : index
    %c8_19 = arith.constant 8 : index
    %41 = vector.load %arg13[%c0_18, %c8_19] : memref<8x32xbf16, #tpu.memory_space<vmem>>, vector<8x8xbf16>
    %cst_20 = arith.constant dense<0.000000e+00> : vector<8x8xf32>
    %42 = tpu.matmul %39, %40, %cst_20 {dimension_numbers = #tpu.dot_dimension_numbers<[1], [1], [0], [0], [0, 0, 1, 0], [], []>} : vector<8x8xbf16>, vector<8x8xbf16>, vector<8x8xf32> -> vector<8x8xf32>
    %cst_21 = arith.constant -1.000000e+30 : f32
    %43 = vector.broadcast %cst_21 : f32 to vector<8x8xf32>
    %44 = arith.select %18, %43, %42 : vector<8x8xi1>, vector<8x8xf32>
    %cst_22 = arith.constant dense<0xFF800000> : vector<8xf32>
    %45 = vector.multi_reduction <maximumf>, %44, %cst_22 [1] : vector<8x8xf32> to vector<8xf32>
    %46 = vector.shape_cast %45 : vector<8xf32> to vector<8x1xf32>
    %47 = vector.broadcast %46 : vector<8x1xf32> to vector<8x8xf32>
    %48 = arith.subf %44, %47 : vector<8x8xf32>
    %49 = math.exp %48 : vector<8x8xf32>
    %cst_23 = arith.constant dense<0.000000e+00> : vector<8xf32>
    %50 = vector.multi_reduction <add>, %49, %cst_23 [1] : vector<8x8xf32> to vector<8xf32>
    %51 = vector.shape_cast %50 : vector<8xf32> to vector<8x1xf32>
    %52 = tpu.reciprocal %51 {approx = true} : vector<8x1xf32> -> vector<8x1xf32>
    %53 = vector.broadcast %52 : vector<8x1xf32> to vector<8x8xf32>
    %54 = arith.mulf %49, %53 : vector<8x8xf32>
    %55 = arith.truncf %54 : vector<8x8xf32> to vector<8x8xbf16>
    %cst_24 = arith.constant dense<0.000000e+00> : vector<8x8xf32>
    %56 = tpu.matmul %55, %41, %cst_24 {dimension_numbers = #tpu.dot_dimension_numbers<[1], [0], [0], [1], [0, 0, 1, 1], [], []>} : vector<8x8xbf16>, vector<8x8xbf16>, vector<8x8xf32> -> vector<8x8xf32>
    %57 = arith.truncf %56 : vector<8x8xf32> to vector<8x8xbf16>
    %c0_25 = arith.constant 0 : index
    %c8_26 = arith.constant 8 : index
    %58 = vector.load %arg14[%c0_25, %c8_26] : memref<8x32xbf16, #tpu.memory_space<vmem>>, vector<8x8xbf16>
    tpu.vector_store %arg14[%c0_25, %c8_26], %57 {strides = array<i32>} : memref<8x32xbf16, #tpu.memory_space<vmem>>, vector<8x8xbf16>,
    %59 = vector.extract_strided_slice %13 {offsets = [0, 16], sizes = [8, 8], strides = [1, 1]} : vector<8x32xbf16> to vector<8x8xbf16>
    %c0_27 = arith.constant 0 : index
    %c16 = arith.constant 16 : index
    %60 = vector.load %arg12[%c0_27, %c16] : memref<8x32xbf16, #tpu.memory_space<vmem>>, vector<8x8xbf16>
    %c0_28 = arith.constant 0 : index
    %c16_29 = arith.constant 16 : index
    %61 = vector.load %arg13[%c0_28, %c16_29] : memref<8x32xbf16, #tpu.memory_space<vmem>>, vector<8x8xbf16>
    %cst_30 = arith.constant dense<0.000000e+00> : vector<8x8xf32>
    %62 = tpu.matmul %59, %60, %cst_30 {dimension_numbers = #tpu.dot_dimension_numbers<[1], [1], [0], [0], [0, 0, 1, 0], [], []>} : vector<8x8xbf16>, vector<8x8xbf16>, vector<8x8xf32> -> vector<8x8xf32>
    %cst_31 = arith.constant -1.000000e+30 : f32
    %63 = vector.broadcast %cst_31 : f32 to vector<8x8xf32>
    %64 = arith.select %18, %63, %62 : vector<8x8xi1>, vector<8x8xf32>
    %cst_32 = arith.constant dense<0xFF800000> : vector<8xf32>
    %65 = vector.multi_reduction <maximumf>, %64, %cst_32 [1] : vector<8x8xf32> to vector<8xf32>
    %66 = vector.shape_cast %65 : vector<8xf32> to vector<8x1xf32>
    %67 = vector.broadcast %66 : vector<8x1xf32> to vector<8x8xf32>
    %68 = arith.subf %64, %67 : vector<8x8xf32>
    %69 = math.exp %68 : vector<8x8xf32>
    %cst_33 = arith.constant dense<0.000000e+00> : vector<8xf32>
    %70 = vector.multi_reduction <add>, %69, %cst_33 [1] : vector<8x8xf32> to vector<8xf32>
    %71 = vector.shape_cast %70 : vector<8xf32> to vector<8x1xf32>
    %72 = tpu.reciprocal %71 {approx = true} : vector<8x1xf32> -> vector<8x1xf32>
    %73 = vector.broadcast %72 : vector<8x1xf32> to vector<8x8xf32>
    %74 = arith.mulf %69, %73 : vector<8x8xf32>
    %75 = arith.truncf %74 : vector<8x8xf32> to vector<8x8xbf16>
    %cst_34 = arith.constant dense<0.000000e+00> : vector<8x8xf32>
    %76 = tpu.matmul %75, %61, %cst_34 {dimension_numbers = #tpu.dot_dimension_numbers<[1], [0], [0], [1], [0, 0, 1, 1], [], []>} : vector<8x8xbf16>, vector<8x8xbf16>, vector<8x8xf32> -> vector<8x8xf32>
    %77 = arith.truncf %76 : vector<8x8xf32> to vector<8x8xbf16>
    %c0_35 = arith.constant 0 : index
    %c16_36 = arith.constant 16 : index
    %78 = vector.load %arg14[%c0_35, %c16_36] : memref<8x32xbf16, #tpu.memory_space<vmem>>, vector<8x8xbf16>
    tpu.vector_store %arg14[%c0_35, %c16_36], %77 {strides = array<i32>} : memref<8x32xbf16, #tpu.memory_space<vmem>>, vector<8x8xbf16>,
    %79 = vector.extract_strided_slice %13 {offsets = [0, 24], sizes = [8, 8], strides = [1, 1]} : vector<8x32xbf16> to vector<8x8xbf16>
    %c0_37 = arith.constant 0 : index
    %c24 = arith.constant 24 : index
    %80 = vector.load %arg12[%c0_37, %c24] : memref<8x32xbf16, #tpu.memory_space<vmem>>, vector<8x8xbf16>
    %c0_38 = arith.constant 0 : index
    %c24_39 = arith.constant 24 : index
    %81 = vector.load %arg13[%c0_38, %c24_39] : memref<8x32xbf16, #tpu.memory_space<vmem>>, vector<8x8xbf16>
    %cst_40 = arith.constant dense<0.000000e+00> : vector<8x8xf32>
    %82 = tpu.matmul %79, %80, %cst_40 {dimension_numbers = #tpu.dot_dimension_numbers<[1], [1], [0], [0], [0, 0, 1, 0], [], []>} : vector<8x8xbf16>, vector<8x8xbf16>, vector<8x8xf32> -> vector<8x8xf32>
    %cst_41 = arith.constant -1.000000e+30 : f32
    %83 = vector.broadcast %cst_41 : f32 to vector<8x8xf32>
    %84 = arith.select %18, %83, %82 : vector<8x8xi1>, vector<8x8xf32>
    %cst_42 = arith.constant dense<0xFF800000> : vector<8xf32>
    %85 = vector.multi_reduction <maximumf>, %84, %cst_42 [1] : vector<8x8xf32> to vector<8xf32>
    %86 = vector.shape_cast %85 : vector<8xf32> to vector<8x1xf32>
    %87 = vector.broadcast %86 : vector<8x1xf32> to vector<8x8xf32>
    %88 = arith.subf %84, %87 : vector<8x8xf32>
    %89 = math.exp %88 : vector<8x8xf32>
    %cst_43 = arith.constant dense<0.000000e+00> : vector<8xf32>
    %90 = vector.multi_reduction <add>, %89, %cst_43 [1] : vector<8x8xf32> to vector<8xf32>
    %91 = vector.shape_cast %90 : vector<8xf32> to vector<8x1xf32>
    %92 = tpu.reciprocal %91 {approx = true} : vector<8x1xf32> -> vector<8x1xf32>
    %93 = vector.broadcast %92 : vector<8x1xf32> to vector<8x8xf32>
    %94 = arith.mulf %89, %93 : vector<8x8xf32>
    %95 = arith.truncf %94 : vector<8x8xf32> to vector<8x8xbf16>
    %cst_44 = arith.constant dense<0.000000e+00> : vector<8x8xf32>
    %96 = tpu.matmul %95, %81, %cst_44 {dimension_numbers = #tpu.dot_dimension_numbers<[1], [0], [0], [1], [0, 0, 1, 1], [], []>} : vector<8x8xbf16>, vector<8x8xbf16>, vector<8x8xf32> -> vector<8x8xf32>
    %97 = arith.truncf %96 : vector<8x8xf32> to vector<8x8xbf16>
    %c0_45 = arith.constant 0 : index
    %c24_46 = arith.constant 24 : index
    %98 = vector.load %arg14[%c0_45, %c24_46] : memref<8x32xbf16, #tpu.memory_space<vmem>>, vector<8x8xbf16>
    tpu.vector_store %arg14[%c0_45, %c24_46], %97 {strides = array<i32>} : memref<8x32xbf16, #tpu.memory_space<vmem>>, vector<8x8xbf16>,
    %c0_47 = arith.constant 0 : index
    %c0_48 = arith.constant 0 : index
    %99 = vector.load %arg14[%c0_47, %c0_48] : memref<8x32xbf16, #tpu.memory_space<vmem>>, vector<8x32xbf16>
    %c0_49 = arith.constant 0 : index
    %c0_50 = arith.constant 0 : index
    %100 = vector.load %arg6[%c0_49, %c0_50] : memref<32x32xbf16, #tpu.memory_space<vmem>>, vector<32x32xbf16>
    %cst_51 = arith.constant dense<0.000000e+00> : vector<8x32xf32>
    %101 = tpu.matmul %99, %100, %cst_51 {dimension_numbers = #tpu.dot_dimension_numbers<[1], [0], [0], [1], [0, 0, 1, 1], [], []>} : vector<8x32xbf16>, vector<32x32xbf16>, vector<8x32xf32> -> vector<8x32xf32>
    %c0_52 = arith.constant 0 : index
    %c0_53 = arith.constant 0 : index
    %102 = vector.load %arg10[%c0_52, %c0_53] : memref<1x32xf32, #tpu.memory_space<vmem>>, vector<1x32xf32>
    %103 = vector.broadcast %102 : vector<1x32xf32> to vector<8x32xf32>
    %104 = arith.addf %101, %103 : vector<8x32xf32>
    %c0_54 = arith.constant 0 : index
    %c0_55 = arith.constant 0 : index
    %c0_56 = arith.constant 0 : index
    %105 = vector.load %arg11[%c0_54, %c0_55, %c0_56] : memref<1x8x32xf32, #tpu.memory_space<vmem>>, vector<1x8x32xf32>
    %106 = vector.shape_cast %105 : vector<1x8x32xf32> to vector<8x32xf32>
    %107 = vector.shape_cast %104 : vector<8x32xf32> to vector<1x8x32xf32>
    tpu.vector_store %arg11[%c0_54, %c0_55, %c0_56], %107 {strides = array<i32>} : memref<1x8x32xf32, #tpu.memory_space<vmem>>, vector<1x8x32xf32>,
    return
  }
  func.func @transform_0(%arg0: i32, %arg1: i32) -> (i32, i32, i32) {
    %c0_i32 = arith.constant 0 : i32
    %c0_i32_0 = arith.constant 0 : i32
    %c0_i32_1 = arith.constant 0 : i32
    return %arg0, %c0_i32, %c0_i32_0 : i32, i32, i32
  }
  func.func @transform_1(%arg0: i32, %arg1: i32) -> (i32, i32) {
    %c0_i32 = arith.constant 0 : i32
    %c0_i32_0 = arith.constant 0 : i32
    %c0_i32_1 = arith.constant 0 : i32
    return %c0_i32, %c0_i32_0 : i32, i32
  }
  func.func @transform_2(%arg0: i32, %arg1: i32) -> (i32, i32) {
    %c0_i32 = arith.constant 0 : i32
    %c0_i32_0 = arith.constant 0 : i32
    %c0_i32_1 = arith.constant 0 : i32
    return %c0_i32, %c0_i32_0 : i32, i32
  }
  func.func @transform_3(%arg0: i32, %arg1: i32) -> (i32, i32) {
    %c0_i32 = arith.constant 0 : i32
    %c0_i32_0 = arith.constant 0 : i32
    %c0_i32_1 = arith.constant 0 : i32
    return %c0_i32, %c0_i32_0 : i32, i32
  }
  func.func @transform_4(%arg0: i32, %arg1: i32) -> (i32, i32) {
    %c0_i32 = arith.constant 0 : i32
    %c0_i32_0 = arith.constant 0 : i32
    %c0_i32_1 = arith.constant 0 : i32
    return %c0_i32, %c0_i32_0 : i32, i32
  }
  func.func @transform_5(%arg0: i32, %arg1: i32) -> (i32, i32) {
    %c0_i32 = arith.constant 0 : i32
    %c0_i32_0 = arith.constant 0 : i32
    %c0_i32_1 = arith.constant 0 : i32
    return %c0_i32, %c0_i32_0 : i32, i32
  }
  func.func @transform_6(%arg0: i32, %arg1: i32) -> (i32, i32) {
    %c0_i32 = arith.constant 0 : i32
    %c0_i32_0 = arith.constant 0 : i32
    %c0_i32_1 = arith.constant 0 : i32
    return %c0_i32, %c0_i32_0 : i32, i32
  }
  func.func @transform_7(%arg0: i32, %arg1: i32) -> (i32, i32) {
    %c0_i32 = arith.constant 0 : i32
    %c0_i32_0 = arith.constant 0 : i32
    %c0_i32_1 = arith.constant 0 : i32
    return %c0_i32, %c0_i32_0 : i32, i32
  }
  func.func @transform_8(%arg0: i32, %arg1: i32) -> (i32, i32) {
    %c0_i32 = arith.constant 0 : i32
    %c0_i32_0 = arith.constant 0 : i32
    %c0_i32_1 = arith.constant 0 : i32
    return %c0_i32, %c0_i32_0 : i32, i32
  }
  func.func @transform_9(%arg0: i32, %arg1: i32) -> (i32, i32, i32) {
    %c0_i32 = arith.constant 0 : i32
    %c0_i32_0 = arith.constant 0 : i32
    return %arg0, %arg1, %c0_i32 : i32, i32, i32
  }
}

</mosaic_0001>

<llo_original>
// kernel: tpu_custom_call.1
$region0: #{tpu_custom_call.1}
  #allocation0 [shape = 'u32[]', space=smem, size = 0x4, offset = 0x4, fixed_abs, tag = 'smem constant byte address 0x4 - core index']
  #allocation1 [shape = 'u32[72,128]{1,0:T(1,128)}', space=vmem, size = 0x9000, scoped, tag = 'internal scratch']
  #allocation2 [shape = 'bf16[8,32]{1,0:T(8,128)(2,1)}', space=vmem, size = 0x800, scoped, tag = 'scratch operand']
  #allocation3 [shape = 'bf16[8,32]{1,0:T(8,128)(2,1)}', space=vmem, size = 0x800, scoped, tag = 'scratch operand']
  #allocation4 [shape = 'bf16[8,32]{1,0:T(8,128)(2,1)}', space=vmem, size = 0x800, scoped, tag = 'scratch operand']
  %s0 = inlined_call_operand.hbm [shape: bf16[2,8,32], index: 0, kind: input, shape index: {}]
  %s1 = inlined_call_operand.hbm [shape: bf16[32,32], index: 1, kind: input, shape index: {}]
  %s2 = inlined_call_operand.hbm [shape: bf16[32,32], index: 2, kind: input, shape index: {}]
  %s3 = inlined_call_operand.hbm [shape: bf16[32,32], index: 3, kind: input, shape index: {}]
  %s4 = inlined_call_operand.hbm [shape: bf16[32,32], index: 4, kind: input, shape index: {}]
  %s5 = inlined_call_operand.vmem [shape: f32[1,32], index: 5, kind: input, shape index: {}]
  %s6 = inlined_call_operand.vmem [shape: f32[1,32], index: 6, kind: input, shape index: {}]
  %s7 = inlined_call_operand.vmem [shape: f32[1,32], index: 7, kind: input, shape index: {}]
  %s8 = inlined_call_operand.vmem [shape: f32[1,32], index: 8, kind: input, shape index: {}]
  %s9 = inlined_call_operand.hbm [shape: f32[2,8,32], index: 9, kind: output, shape index: {}]
  %s10 = sld [smem:[#allocation0]]
  $region93: #{tpu_custom_call.1} parent=0
    _
  %s12 = ssub.s32 1, %s10
  %s13 = scalar_select 0, %s12, %s10
  $region1: #{tpu_custom_call.1} parent=0
    #allocation5 [shape = 'u8[4096]{0}', space=vmem, size = 0x1000, scoped, tag = 'input window, operand 0']
    #allocation6 [shape = 's32[2]{0}', space=sflag, size = 0x8, scoped, tag = 'scoped memory for tpu_custom_call.1']
    #allocation7 [shape = 's32[2]{0}', space=sflag, size = 0x8, scoped, tag = 'scoped memory for tpu_custom_call.1']
    #allocation8 [shape = 'u8[8192]{0}', space=vmem, size = 0x2000, scoped, tag = 'input window, operand 1, single buffered']
    #allocation9 [shape = 's32[1]{0}', space=sflag, size = 0x4, scoped, tag = 'scoped memory for tpu_custom_call.1']
    #allocation10 [shape = 'u8[8192]{0}', space=vmem, size = 0x2000, scoped, tag = 'input window, operand 2, single buffered']
    #allocation11 [shape = 'u8[8192]{0}', space=vmem, size = 0x2000, scoped, tag = 'input window, operand 3, single buffered']
    #allocation12 [shape = 's32[1]{0}', space=sflag, size = 0x4, scoped, tag = 'scoped memory for tpu_custom_call.1']
    #allocation13 [shape = 'u8[8192]{0}', space=vmem, size = 0x2000, scoped, tag = 'input window, operand 4, single buffered']
    #allocation14 [shape = 'u8[8192]{0}', space=vmem, size = 0x2000, scoped, tag = 'output window, operand 0']
    %14 = vsyncpa [#allocation6], 0
    %s15 = scalar_lea.sflag [#allocation6], 1
    %16 = vsyncpa %s15, 0
    %17 = vsyncpa [#allocation9], 0
    %18 = vsyncpa [#allocation12], 0
    %19 = vsyncpa [#allocation7], 0
    %s20 = scalar_lea.sflag [#allocation7], 1
    %21 = vsyncpa %s20, 0
    loop: start=0, step=1, limit=4
    $region2: #{tpu_custom_call.1} parent=1 // loop_pre_header
      _
    $region3: #{tpu_custom_call.1} parent=1 // loop_header
      %s23 = sphi 0, %s27
      %p24 = scmp.ge.s32.totalorder %s23, 4
      %s30 = sphi 0, %s42
      %s31 = sphi 0, %s38
      %s32 = sphi 0, %s30
      %s33 = sphi 0, %s31
      %s34 = sphi 0, %s32
      %s35 = sphi 0, %s33
      %s45 = sphi 0, %s47
      %s48 = sphi 0, %s45
      %s49 = sphi 0, %s48
      %s65 = sphi 0, %s49
      %s69 = sphi 0, %s69
      %s71 = sphi 0, %s69
      %s72 = sphi 0, %s71
      %s86 = sphi 0, %s72
      %s90 = sphi 0, %s90
      %s92 = sphi 0, %s90
      %s93 = sphi 0, %s92
      %s107 = sphi 0, %s93
      %s111 = sphi 0, %s111
      %s113 = sphi 0, %s111
      %s114 = sphi 0, %s113
      %s128 = sphi 0, %s114
      %s132 = sphi 0, %s132
      %s134 = sphi 0, %s132
      %s135 = sphi 0, %s134
      %s149 = sphi 0, %s135
      %s153 = sphi 0, %s153
      %s155 = sphi 0, %s153
      %s156 = sphi 0, %s155
      %s170 = sphi 0, %s156
      %s174 = sphi 0, %s174
      %s176 = sphi 0, %s174
      %s177 = sphi 0, %s176
      %s191 = sphi 0, %s177
      %s195 = sphi 0, %s195
      %s197 = sphi 0, %s195
      %s198 = sphi 0, %s197
      %s212 = sphi 0, %s198
      %s216 = sphi 0, %s216
      %s218 = sphi 0, %s216
      %s219 = sphi 0, %s218
      %s233 = sphi 0, %s219
      %s241 = sphi 0, %s243
      %s244 = sphi 0, %s241
      %s245 = sphi 0, %s244
      %s261 = sphi 0, %s245
    $region4: #{tpu_custom_call.1} parent=1 // loop_header_branch
      %26 = sbr.rel (%p24) target = $region8
    $region5: #{tpu_custom_call.1} parent=1 // loop_body
      %s28 = ssub.s32 %s23, 1
      %s29 = ssub.s32 %s23, 2
      %s36 = sadd.s32 1, %s31
      %p37 = scmp.ge.s32.totalorder %s36, 1
      %s38 = scalar_select %p37, 0, %s36
      %s39 = sadd.s32 1, %s30
      %s40 = scalar_select %p37, %s39, %s30
      %p41 = scmp.ge.s32.totalorder %s40, 2
      %s42 = scalar_select %p41, 0, %s40
      %s43 = ssub.s32 %s30, %s42
      %p44 = scmp.eq.s32.totalorder %s43, 0
      %s46 = sadd.s32 %s45, 1
      %s47 = scalar_select %p44, %s45, %s46
      %p50 = pneg %p44
      %p51 = scmp.eq.s32.totalorder %s23, 1
      %p52 = por %p50, %p51
      %p53 = scmp.ne.s32.totalorder %s45, %s48
      %p54 = scmp.eq.s32.totalorder %s23, 0
      %p55 = por %p53, %p54
      %p56 = scmp.ne.s32.totalorder %s45, %s48
      %p57 = scmp.eq.s32.totalorder %s28, 1
      %p58 = por %p56, %p57
      %p59 = scmp.ne.s32.totalorder %s48, %s49
      %p60 = scmp.eq.s32.totalorder %s28, 0
      %p61 = por %p59, %p60
      %p62 = scmp.ne.s32.totalorder %s48, %s49
      %p63 = scmp.eq.s32.totalorder %s29, 1
      %p64 = por %p62, %p63
      %p66 = scmp.ne.s32.totalorder %s49, %s65
      %p67 = scmp.eq.s32.totalorder %s29, 0
      %p68 = por %p66, %p67
      %s70 = sadd.s32 %s69, 1
      %p73 = scmp.eq.s32.totalorder %s23, 1
      %p74 = scmp.ne.s32.totalorder %s69, %s71
      %p75 = scmp.eq.s32.totalorder %s23, 0
      %p76 = por %p74, %p75
      %p77 = scmp.ne.s32.totalorder %s69, %s71
      %p78 = scmp.eq.s32.totalorder %s28, 1
      %p79 = por %p77, %p78
      %p80 = scmp.ne.s32.totalorder %s71, %s72
      %p81 = scmp.eq.s32.totalorder %s28, 0
      %p82 = por %p80, %p81
      %p83 = scmp.ne.s32.totalorder %s71, %s72
      %p84 = scmp.eq.s32.totalorder %s29, 1
      %p85 = por %p83, %p84
      %p87 = scmp.ne.s32.totalorder %s72, %s86
      %p88 = scmp.eq.s32.totalorder %s29, 0
      %p89 = por %p87, %p88
      %s91 = sadd.s32 %s90, 1
      %p94 = scmp.eq.s32.totalorder %s23, 1
      %p95 = scmp.ne.s32.totalorder %s90, %s92
      %p96 = scmp.eq.s32.totalorder %s23, 0
      %p97 = por %p95, %p96
      %p98 = scmp.ne.s32.totalorder %s90, %s92
      %p99 = scmp.eq.s32.totalorder %s28, 1
      %p100 = por %p98, %p99
      %p101 = scmp.ne.s32.totalorder %s92, %s93
      %p102 = scmp.eq.s32.totalorder %s28, 0
      %p103 = por %p101, %p102
      %p104 = scmp.ne.s32.totalorder %s92, %s93
      %p105 = scmp.eq.s32.totalorder %s29, 1
      %p106 = por %p104, %p105
      %p108 = scmp.ne.s32.totalorder %s93, %s107
      %p109 = scmp.eq.s32.totalorder %s29, 0
      %p110 = por %p108, %p109
      %s112 = sadd.s32 %s111, 1
      %p115 = scmp.eq.s32.totalorder %s23, 1
      %p116 = scmp.ne.s32.totalorder %s111, %s113
      %p117 = scmp.eq.s32.totalorder %s23, 0
      %p118 = por %p116, %p117
      %p119 = scmp.ne.s32.totalorder %s111, %s113
      %p120 = scmp.eq.s32.totalorder %s28, 1
      %p121 = por %p119, %p120
      %p122 = scmp.ne.s32.totalorder %s113, %s114
      %p123 = scmp.eq.s32.totalorder %s28, 0
      %p124 = por %p122, %p123
      %p125 = scmp.ne.s32.totalorder %s113, %s114
      %p126 = scmp.eq.s32.totalorder %s29, 1
      %p127 = por %p125, %p126
      %p129 = scmp.ne.s32.totalorder %s114, %s128
      %p130 = scmp.eq.s32.totalorder %s29, 0
      %p131 = por %p129, %p130
      %s133 = sadd.s32 %s132, 1
      %p136 = scmp.eq.s32.totalorder %s23, 1
      %p137 = scmp.ne.s32.totalorder %s132, %s134
      %p138 = scmp.eq.s32.totalorder %s23, 0
      %p139 = por %p137, %p138
      %p140 = scmp.ne.s32.totalorder %s132, %s134
      %p141 = scmp.eq.s32.totalorder %s28, 1
      %p142 = por %p140, %p141
      %p143 = scmp.ne.s32.totalorder %s134, %s135
      %p144 = scmp.eq.s32.totalorder %s28, 0
      %p145 = por %p143, %p144
      %p146 = scmp.ne.s32.totalorder %s134, %s135
      %p147 = scmp.eq.s32.totalorder %s29, 1
      %p148 = por %p146, %p147
      %p150 = scmp.ne.s32.totalorder %s135, %s149
      %p151 = scmp.eq.s32.totalorder %s29, 0
      %p152 = por %p150, %p151
      %s154 = sadd.s32 %s153, 1
      %p157 = scmp.eq.s32.totalorder %s23, 1
      %p158 = scmp.ne.s32.totalorder %s153, %s155
      %p159 = scmp.eq.s32.totalorder %s23, 0
      %p160 = por %p158, %p159
      %p161 = scmp.ne.s32.totalorder %s153, %s155
      %p162 = scmp.eq.s32.totalorder %s28, 1
      %p163 = por %p161, %p162
      %p164 = scmp.ne.s32.totalorder %s155, %s156
      %p165 = scmp.eq.s32.totalorder %s28, 0
      %p166 = por %p164, %p165
      %p167 = scmp.ne.s32.totalorder %s155, %s156
      %p168 = scmp.eq.s32.totalorder %s29, 1
      %p169 = por %p167, %p168
      %p171 = scmp.ne.s32.totalorder %s156, %s170
      %p172 = scmp.eq.s32.totalorder %s29, 0
      %p173 = por %p171, %p172
      %s175 = sadd.s32 %s174, 1
      %p178 = scmp.eq.s32.totalorder %s23, 1
      %p179 = scmp.ne.s32.totalorder %s174, %s176
      %p180 = scmp.eq.s32.totalorder %s23, 0
      %p181 = por %p179, %p180
      %p182 = scmp.ne.s32.totalorder %s174, %s176
      %p183 = scmp.eq.s32.totalorder %s28, 1
      %p184 = por %p182, %p183
      %p185 = scmp.ne.s32.totalorder %s176, %s177
      %p186 = scmp.eq.s32.totalorder %s28, 0
      %p187 = por %p185, %p186
      %p188 = scmp.ne.s32.totalorder %s176, %s177
      %p189 = scmp.eq.s32.totalorder %s29, 1
      %p190 = por %p188, %p189
      %p192 = scmp.ne.s32.totalorder %s177, %s191
      %p193 = scmp.eq.s32.totalorder %s29, 0
      %p194 = por %p192, %p193
      %s196 = sadd.s32 %s195, 1
      %p199 = scmp.eq.s32.totalorder %s23, 1
      %p200 = scmp.ne.s32.totalorder %s195, %s197
      %p201 = scmp.eq.s32.totalorder %s23, 0
      %p202 = por %p200, %p201
      %p203 = scmp.ne.s32.totalorder %s195, %s197
      %p204 = scmp.eq.s32.totalorder %s28, 1
      %p205 = por %p203, %p204
      %p206 = scmp.ne.s32.totalorder %s197, %s198
      %p207 = scmp.eq.s32.totalorder %s28, 0
      %p208 = por %p206, %p207
      %p209 = scmp.ne.s32.totalorder %s197, %s198
      %p210 = scmp.eq.s32.totalorder %s29, 1
      %p211 = por %p209, %p210
      %p213 = scmp.ne.s32.totalorder %s198, %s212
      %p214 = scmp.eq.s32.totalorder %s29, 0
      %p215 = por %p213, %p214
      %s217 = sadd.s32 %s216, 1
      %p220 = scmp.eq.s32.totalorder %s23, 1
      %p221 = scmp.ne.s32.totalorder %s216, %s218
      %p222 = scmp.eq.s32.totalorder %s23, 0
      %p223 = por %p221, %p222
      %p224 = scmp.ne.s32.totalorder %s216, %s218
      %p225 = scmp.eq.s32.totalorder %s28, 1
      %p226 = por %p224, %p225
      %p227 = scmp.ne.s32.totalorder %s218, %s219
      %p228 = scmp.eq.s32.totalorder %s28, 0
      %p229 = por %p227, %p228
      %p230 = scmp.ne.s32.totalorder %s218, %s219
      %p231 = scmp.eq.s32.totalorder %s29, 1
      %p232 = por %p230, %p231
      %p234 = scmp.ne.s32.totalorder %s219, %s233
      %p235 = scmp.eq.s32.totalorder %s29, 0
      %p236 = por %p234, %p235
      %s237 = ssub.s32 %s30, %s42
      %s238 = ssub.s32 %s31, %s38
      %s239 = sor.u32 %s237, %s238
      %p240 = scmp.eq.s32.totalorder %s239, 0
      %s242 = sadd.s32 %s241, 1
      %s243 = scalar_select %p240, %s241, %s242
      %p246 = pneg %p240
      %p247 = scmp.eq.s32.totalorder %s23, 1
      %p248 = por %p246, %p247
      %p249 = scmp.ne.s32.totalorder %s241, %s244
      %p250 = scmp.eq.s32.totalorder %s23, 0
      %p251 = por %p249, %p250
      %p252 = scmp.ne.s32.totalorder %s241, %s244
      %p253 = scmp.eq.s32.totalorder %s28, 1
      %p254 = por %p252, %p253
      %p255 = scmp.ne.s32.totalorder %s244, %s245
      %p256 = scmp.eq.s32.totalorder %s28, 0
      %p257 = por %p255, %p256
      %p258 = scmp.ne.s32.totalorder %s244, %s245
      %p259 = scmp.eq.s32.totalorder %s29, 1
      %p260 = por %p258, %p259
      %p262 = scmp.ne.s32.totalorder %s245, %s261
      %p263 = scmp.eq.s32.totalorder %s29, 0
      %p264 = por %p262, %p263
      %p265 = scmp.le.s32.totalorder 1, %s23
      %p266 = scmp.lt.s32.totalorder %s23, 3
      %p267 = pnand %p265, %p266
      %p268 = pneg %p267
      // Predicated region
      $region9: #{tpu_custom_call.1} parent=5 // pred_check
        _
      $region10: #{tpu_custom_call.1} parent=5 // pred_check_branch
        %270 = sbr.rel (%p267) target = $region12
      $region11: #{tpu_custom_call.1} parent=5 // pred_region
        %s271 = ssub.s32 %s23, 1
        // Predicated region
        $region13: #{tpu_custom_call.1} parent=11 // pred_check
          %p272 = pneg %p82
        $region14: #{tpu_custom_call.1} parent=11 // pred_check_branch
          %274 = sbr.rel (%p272) target = $region16
        $region15: #{tpu_custom_call.1} parent=11 // pred_region
          %276 = vsyncadd [#allocation9], 0
          %s277 = sshll.u32 %s1, 4
          %s278 = int_to_ptr.hbm [resolvable:$true] %s277
          %s279 = sshll.u32 [#allocation8], 4
          %s280 = int_to_ptr.vmem [resolvable:$true] %s279
          %285 = dma.hbm_to_vmem [thread:$0]  %s278, 256, %s280, [#allocation9], 64, 64, 4
        $region16: #{tpu_custom_call.1} parent=11 // pred_fallthru
          _
        // Predicated region
        $region17: #{tpu_custom_call.1} parent=11 // pred_check
          %p286 = pneg %p103
        $region18: #{tpu_custom_call.1} parent=11 // pred_check_branch
          %288 = sbr.rel (%p286) target = $region20
        $region19: #{tpu_custom_call.1} parent=11 // pred_region
          %290 = vsyncadd [#allocation9], 0
          %s291 = sshll.u32 %s2, 4
          %s292 = int_to_ptr.hbm [resolvable:$true] %s291
          %s293 = sshll.u32 [#allocation10], 4
          %s294 = int_to_ptr.vmem [resolvable:$true] %s293
          %299 = dma.hbm_to_vmem [thread:$0]  %s292, 256, %s294, [#allocation9], 64, 64, 4
        $region20: #{tpu_custom_call.1} parent=11 // pred_fallthru
          _
        // Predicated region
        $region21: #{tpu_custom_call.1} parent=11 // pred_check
          %p300 = pneg %p124
        $region22: #{tpu_custom_call.1} parent=11 // pred_check_branch
          %302 = sbr.rel (%p300) target = $region24
        $region23: #{tpu_custom_call.1} parent=11 // pred_region
          %304 = vsyncadd [#allocation12], 0
          %s305 = sshll.u32 %s3, 4
          %s306 = int_to_ptr.hbm [resolvable:$true] %s305
          %s307 = sshll.u32 [#allocation11], 4
          %s308 = int_to_ptr.vmem [resolvable:$true] %s307
          %313 = dma.hbm_to_vmem [thread:$0]  %s306, 256, %s308, [#allocation12], 64, 64, 4
        $region24: #{tpu_custom_call.1} parent=11 // pred_fallthru
          _
        // Predicated region
        $region25: #{tpu_custom_call.1} parent=11 // pred_check
          %p314 = pneg %p145
        $region26: #{tpu_custom_call.1} parent=11 // pred_check_branch
          %316 = sbr.rel (%p314) target = $region28
        $region27: #{tpu_custom_call.1} parent=11 // pred_region
          %318 = vsyncadd [#allocation12], 0
          %s319 = sshll.u32 %s4, 4
          %s320 = int_to_ptr.hbm [resolvable:$true] %s319
          %s321 = sshll.u32 [#allocation13], 4
          %s322 = int_to_ptr.vmem [resolvable:$true] %s321
          %327 = dma.hbm_to_vmem [thread:$0]  %s320, 256, %s322, [#allocation12], 64, 64, 4
        $region28: #{tpu_custom_call.1} parent=11 // pred_fallthru
          _
        // Predicated region
        $region29: #{tpu_custom_call.1} parent=11 // pred_check
          %p328 = pneg %p166
        $region30: #{tpu_custom_call.1} parent=11 // pred_check_branch
          %330 = sbr.rel (%p328) target = $region32
        $region31: #{tpu_custom_call.1} parent=11 // pred_region
          _
        $region32: #{tpu_custom_call.1} parent=11 // pred_fallthru
          _
        // Predicated region
        $region33: #{tpu_custom_call.1} parent=11 // pred_check
          %p331 = pneg %p187
        $region34: #{tpu_custom_call.1} parent=11 // pred_check_branch
          %333 = sbr.rel (%p331) target = $region36
        $region35: #{tpu_custom_call.1} parent=11 // pred_region
          _
        $region36: #{tpu_custom_call.1} parent=11 // pred_fallthru
          _
        // Predicated region
        $region37: #{tpu_custom_call.1} parent=11 // pred_check
          %p334 = pneg %p208
        $region38: #{tpu_custom_call.1} parent=11 // pred_check_branch
          %336 = sbr.rel (%p334) target = $region40
        $region39: #{tpu_custom_call.1} parent=11 // pred_region
          _
        $region40: #{tpu_custom_call.1} parent=11 // pred_fallthru
          _
        // Predicated region
        $region41: #{tpu_custom_call.1} parent=11 // pred_check
          %p337 = pneg %p229
        $region42: #{tpu_custom_call.1} parent=11 // pred_check_branch
          %339 = sbr.rel (%p337) target = $region44
        $region43: #{tpu_custom_call.1} parent=11 // pred_region
          _
        $region44: #{tpu_custom_call.1} parent=11 // pred_fallthru
          _
      $region12: #{tpu_custom_call.1} parent=5 // pred_fallthru
        _
      %p340 = scmp.lt.s32.totalorder %s23, 2
      // Predicated region
      $region45: #{tpu_custom_call.1} parent=5 // pred_check
        %p341 = pneg %p340
      $region46: #{tpu_custom_call.1} parent=5 // pred_check_branch
        %343 = sbr.rel (%p341) target = $region48
      $region47: #{tpu_custom_call.1} parent=5 // pred_region
        // Predicated region
        $region49: #{tpu_custom_call.1} parent=47 // pred_check
          %p344 = pneg %p55
        $region50: #{tpu_custom_call.1} parent=47 // pred_check_branch
          %346 = sbr.rel (%p344) target = $region52
        $region51: #{tpu_custom_call.1} parent=47 // pred_region
          %s347 = sand.u32 %s45, 1
          %s348 = scalar_lea.sflag [#allocation6], %s347
          %s349 = sand.u32 %s45, 1
          %s350 = smul.addr %s349, 4
          %s351 = scalar_lea.vmem [#allocation5], %s350
          %353 = vsyncadd %s348, 0
          %s354 = smul.addr %s30, 4
          %s355 = scalar_lea.hbm %s0, %s354
          %s357 = sshll.u32 %s355, 4
          %s358 = int_to_ptr.hbm [resolvable:$true] %s357
          %s359 = sshll.u32 %s351, 4
          %s360 = int_to_ptr.vmem [resolvable:$true] %s359
          %362 = dma.hbm_to_vmem [thread:$0]  %s358, 64, %s360, %s348
        $region52: #{tpu_custom_call.1} parent=47 // pred_fallthru
          _
      $region48: #{tpu_custom_call.1} parent=5 // pred_fallthru
        _
      %p363 = scmp.le.s32.totalorder 1, %s23
      %p364 = scmp.lt.s32.totalorder %s23, 3
      %p365 = pnand %p363, %p364
      %p366 = pneg %p365
      // Predicated region
      $region53: #{tpu_custom_call.1} parent=5 // pred_check
        _
      $region54: #{tpu_custom_call.1} parent=5 // pred_check_branch
        %368 = sbr.rel (%p365) target = $region56
      $region55: #{tpu_custom_call.1} parent=5 // pred_region
        %s369 = ssub.s32 %s23, 1
        %s370 = sand.u32 %s48, 1
        %s371 = scalar_lea.sflag [#allocation6], %s370
        %s372 = sand.u32 %s48, 1
        %s373 = smul.addr %s372, 4
        %s374 = scalar_lea.vmem [#allocation5], %s373
        // Predicated region
        $region57: #{tpu_custom_call.1} parent=55 // pred_check
          %p375 = pneg %p61
        $region58: #{tpu_custom_call.1} parent=55 // pred_check_branch
          %377 = sbr.rel (%p375) target = $region60
        $region59: #{tpu_custom_call.1} parent=55 // pred_region
          %379 = dma.done %s371, 64
        $region60: #{tpu_custom_call.1} parent=55 // pred_fallthru
          _
        // Predicated region
        $region61: #{tpu_custom_call.1} parent=55 // pred_check
          %p380 = pneg %p82
        $region62: #{tpu_custom_call.1} parent=55 // pred_check_branch
          %382 = sbr.rel (%p380) target = $region64
        $region63: #{tpu_custom_call.1} parent=55 // pred_region
          %384 = dma.done [#allocation9], 256
        $region64: #{tpu_custom_call.1} parent=55 // pred_fallthru
          _
        // Predicated region
        $region65: #{tpu_custom_call.1} parent=55 // pred_check
          %p385 = pneg %p103
        $region66: #{tpu_custom_call.1} parent=55 // pred_check_branch
          %387 = sbr.rel (%p385) target = $region68
        $region67: #{tpu_custom_call.1} parent=55 // pred_region
          %389 = dma.done [#allocation9], 256
        $region68: #{tpu_custom_call.1} parent=55 // pred_fallthru
          _
        // Predicated region
        $region69: #{tpu_custom_call.1} parent=55 // pred_check
          %p390 = pneg %p124
        $region70: #{tpu_custom_call.1} parent=55 // pred_check_branch
          %392 = sbr.rel (%p390) target = $region72
        $region71: #{tpu_custom_call.1} parent=55 // pred_region
          %394 = dma.done [#allocation12], 256
        $region72: #{tpu_custom_call.1} parent=55 // pred_fallthru
          _
        // Predicated region
        $region73: #{tpu_custom_call.1} parent=55 // pred_check
          %p395 = pneg %p145
        $region74: #{tpu_custom_call.1} parent=55 // pred_check_branch
          %397 = sbr.rel (%p395) target = $region76
        $region75: #{tpu_custom_call.1} parent=55 // pred_region
          %399 = dma.done [#allocation12], 256
        $region76: #{tpu_custom_call.1} parent=55 // pred_fallthru
          _
        %s400 = sand.u32 %s48, 1
        %s401 = scalar_lea.sflag [#allocation6], %s400
        %s402 = sand.u32 %s48, 1
        %s403 = smul.addr %s402, 4
        %s404 = scalar_lea.vmem [#allocation5], %s403
        %p405 = pneg %p61
        %p406 = pneg %p58
        %p407 = pneg %p82
        %p408 = pneg %p79
        %p409 = pneg %p103
        %p410 = pneg %p100
        %p411 = pneg %p124
        %p412 = pneg %p121
        %p413 = pneg %p145
        %p414 = pneg %p142
        %p415 = pneg %p166
        %p416 = pneg %p163
        %p417 = pneg %p187
        %p418 = pneg %p184
        %p419 = pneg %p208
        %p420 = pneg %p205
        %p421 = pneg %p229
        %p422 = pneg %p226
        %p423 = pneg %p257
        %p424 = pneg %p254
        %s425 = sand.u32 %s244, 1
        %s426 = scalar_lea.sflag [#allocation7], %s425
        %s427 = sand.u32 %s244, 1
        %s428 = smul.addr %s427, 8
        %s429 = scalar_lea.vmem [#allocation14], %s428
        %s431 = smul.u32 %s33, 8
        %p432 = scmp.eq.s32.totalorder %s33, 0
        // Predicated region
        $region77: #{tpu_custom_call.1} parent=55 // pred_check
          %p433 = pneg %p432
        $region78: #{tpu_custom_call.1} parent=55 // pred_check_branch
          %435 = sbr.rel (%p433) target = $region80
        $region79: #{tpu_custom_call.1} parent=55 // pred_region
          %v436 = vld [vmem:[%s374] sm:$0xf]
          %v437 = vld [vmem:[#allocation10] sm:$0xf]
          %v438 = vld [vmem:[#allocation10 + $0x4] sm:$0xf]
          %v439 = vld [vmem:[#allocation10 + $0x8] sm:$0xf]
          %v440 = vld [vmem:[#allocation10 + $0xc] sm:$0xf]
          %v441 = vld [vmem:[%s6] sm:$0x1]
          %v443 = vperm.slane %v441, 0
          %v449 = vunpack.c.l.b16 %v437
          %v450 = vunpack.c.l.b16 %v438
          %v451 = vunpack.c.l.b16 %v439
          %v452 = vunpack.c.l.b16 %v440
          %v453 = vpack.c.b16 %v450, %v449
          %v454 = vpack.c.b16 %v452, %v451
          %vm457 = vcmask 261120
          %v459 = vsel %vm457, %v436, 0
          %461 = vmatpush.bf16.msra.mxu0 0
          %462 = vmatpush.bf16.msra.mxu0 0
          %463 = vmatpush.bf16.msra.mxu0 0
          %464 = vmatpush.bf16.msra.mxu0 0
          %465 = vmatpush.bf16.msra.mxu0 0
          %466 = vmatpush.bf16.msra.mxu0 0
          %467 = vmatpush.bf16.msra.mxu0 %v454
          %468 = vmatpush.bf16.msra.mxu0 %v453
          %469 = vmatmul.bf16.gmra.mxu0 %v459
          %v470 = vpop.f32.mrf.mxu0
          %v471 = vadd.f32 %v443, %v470
          %v472 = vpop.f32.mrf.mxu0
          %473 = vdwg.mxu0
          %v474 = vpack.c.bf16 %v471, %v471
          %vm475 = vcmask 257024
          %476 = vst.msk [vmem:[#allocation2] sm:$0xf] %vm475, %v474
          %v477 = vld [vmem:[#allocation11] sm:$0xf]
          %v478 = vld [vmem:[#allocation11 + $0x4] sm:$0xf]
          %v479 = vld [vmem:[#allocation11 + $0x8] sm:$0xf]
          %v480 = vld [vmem:[#allocation11 + $0xc] sm:$0xf]
          %v481 = vld [vmem:[%s7] sm:$0x1]
          %v483 = vperm.slane %v481, 0
          %v489 = vunpack.c.l.b16 %v477
          %v490 = vunpack.c.l.b16 %v478
          %v491 = vunpack.c.l.b16 %v479
          %v492 = vunpack.c.l.b16 %v480
          %v493 = vpack.c.b16 %v490, %v489
          %v494 = vpack.c.b16 %v492, %v491
          %497 = vmatpush.bf16.msra.mxu0 0
          %498 = vmatpush.bf16.msra.mxu0 0
          %499 = vmatpush.bf16.msra.mxu0 0
          %500 = vmatpush.bf16.msra.mxu0 0
          %501 = vmatpush.bf16.msra.mxu0 0
          %502 = vmatpush.bf16.msra.mxu0 0
          %503 = vmatpush.bf16.msra.mxu0 %v494
          %504 = vmatpush.bf16.msra.mxu0 %v493
          %505 = vmatmul.bf16.gmra.mxu0 %v459
          %v506 = vpop.f32.mrf.mxu0
          %v507 = vadd.f32 %v483, %v506
          %v508 = vpop.f32.mrf.mxu0
          %509 = vdwg.mxu0
          %v510 = vpack.c.bf16 %v507, %v507
          %511 = vst.msk [vmem:[#allocation3] sm:$0xf] %vm475, %v510
        $region80: #{tpu_custom_call.1} parent=55 // pred_fallthru
          _
        %s512 = sshra.s32 %s431, 3
        %s513 = sand.u32 %s431, 7
        %s514 = smul.addr %s512, 4
        %s515 = scalar_lea.vmem %s374, %s514 [#allocation5]
        %v516 = vld [vmem:[%s515] sm:$0xf]
        %v517 = vld [vmem:[#allocation8] sm:$0xf]
        %v518 = vld [vmem:[#allocation8 + $0x4] sm:$0xf]
        %v519 = vld [vmem:[#allocation8 + $0x8] sm:$0xf]
        %v520 = vld [vmem:[#allocation8 + $0xc] sm:$0xf]
        %v521 = vld [vmem:[%s5] sm:$0x1]
        %v523 = vperm.slane %v521, 0
        %v529 = vunpack.c.l.b16 %v517
        %v530 = vunpack.c.l.b16 %v518
        %v531 = vunpack.c.l.b16 %v519
        %v532 = vunpack.c.l.b16 %v520
        %v533 = vpack.c.b16 %v530, %v529
        %v534 = vpack.c.b16 %v532, %v531
        %vm537 = vcmask 261120
        %v539 = vsel %vm537, %v516, 0
        %541 = vmatpush.bf16.msra.mxu0 0
        %542 = vmatpush.bf16.msra.mxu0 0
        %543 = vmatpush.bf16.msra.mxu0 0
        %544 = vmatpush.bf16.msra.mxu0 0
        %545 = vmatpush.bf16.msra.mxu0 0
        %546 = vmatpush.bf16.msra.mxu0 0
        %547 = vmatpush.bf16.msra.mxu0 %v534
        %548 = vmatpush.bf16.msra.mxu0 %v533
        %549 = vmatmul.bf16.gmra.mxu0 %v539
        %v550 = vpop.f32.mrf.mxu0
        %v551 = vadd.f32 %v523, %v550
        %v552 = vpop.f32.mrf.mxu0
        %553 = vdwg.mxu0
        %v554 = vpack.c.bf16 %v551, %v551
        %v555 = vlaneseq
        %v556 = vshrl.u32 %v555, 7
        %v557 = vstv %s431
        %v558 = vadd.s32 %v557, %v556
        %v559 = vlaneseq
        %v560 = vand.u32 %v559, 127
        %vm561 = vcmp.gt.s32.totalorder %v560, %v558
        %v562 = vld [vmem:[#allocation2] sm:$0xf]
        %v563 = vld [vmem:[#allocation3] sm:$0xf]
        %vm564 = vcmask 64512
        %v566 = vsel %vm564, %v554, 0
        %v569 = vsel %vm564, %v562, 0
        %571 = vmatpush.bf16.xpose.msra.mxu0 0
        %572 = vmatpush.bf16.xpose.msra.mxu0 0
        %573 = vmatpush.bf16.xpose.msra.mxu0 0
        %574 = vmatpush.bf16.xpose.msra.mxu0 0
        %575 = vmatpush.bf16.xpose.msra.mxu0 0
        %576 = vmatpush.bf16.xpose.msra.mxu0 0
        %577 = vmatpush.bf16.xpose.msra.mxu0 0
        %578 = vmatpush.bf16.xpose.msra.mxu0 %v569
        %579 = vmatmul.bf16.gmra.mxu0 %v566
        %v580 = vpop.f32.mrf.mxu0
        %v581 = vadd.f32 0.0, %v580
        %v582 = vpop.f32.mrf.mxu0
        %583 = vdwg.mxu0
        %v584 = vsel %vm561, -1e+30, %v581
        %v585 = vsel %vm564, %v584, -inf
        %586 = vmax.xlane.f32.xlu0 %v585
        %v587 = vpop.xlane.xlu0 %586
        %v588 = vsub.f32 %v584, %v587
        %v589 = vmul.f32 %v588, 1.442695
        %v590 = vpow.pop %v589
        %v591 = vsel %vm564, %v590, 0.0
        %592 = vadd.xlane.f32.xlu0 %v591
        %v593 = vpop.xlane.xlu0 %592
        %v594 = vrcp.pop %v593
        %v595 = vmul.f32 %v590, %v594
        %v596 = vpack.c.bf16 %v595, %v595
        %v598 = vsel %vm564, %v596, 0
        %vm600 = vcmask 1043456
        %v602 = vsel %vm600, %v563, 0
        %604 = vmatpush.bf16.msra.mxu0 0
        %605 = vmatpush.bf16.msra.mxu0 0
        %606 = vmatpush.bf16.msra.mxu0 0
        %607 = vmatpush.bf16.msra.mxu0 0
        %608 = vmatpush.bf16.msra.mxu0 0
        %609 = vmatpush.bf16.msra.mxu0 0
        %610 = vmatpush.bf16.msra.mxu0 0
        %611 = vmatpush.bf16.msra.mxu0 %v602
        %612 = vmatmul.bf16.gmra.mxu0 %v598
        %v613 = vpop.f32.mrf.mxu0
        %v614 = vadd.f32 0.0, %v613
        %v615 = vpop.f32.mrf.mxu0
        %616 = vdwg.mxu0
        %v617 = vpack.c.bf16 %v614, %v614
        %vm618 = vcmask 60416
        %619 = vst.msk [vmem:[#allocation4] sm:$0xf] %vm618, %v617
        %v620 = vld [vmem:[#allocation2] sm:$0xf]
        %v621 = vld [vmem:[#allocation3] sm:$0xf]
        %v623 = vunpack.c.l.b16 %v554
        %v624 = vpack.c.b16 %v623, %v623
        %625 = vrot.lane.b32.xlu0 %v624, 120
        %v626 = vpop.permute.xlu0 %625
        %v628 = vunpack.c.l.b16 %v620
        %v629 = vpack.c.b16 %v628, %v628
        %630 = vrot.lane.b32.xlu0 %v629, 120
        %v631 = vpop.permute.xlu0 %630
        %v633 = vsel %vm564, %v626, 0
        %v636 = vsel %vm564, %v631, 0
        %638 = vmatpush.bf16.xpose.msra.mxu0 0
        %639 = vmatpush.bf16.xpose.msra.mxu0 0
        %640 = vmatpush.bf16.xpose.msra.mxu0 0
        %641 = vmatpush.bf16.xpose.msra.mxu0 0
        %642 = vmatpush.bf16.xpose.msra.mxu0 0
        %643 = vmatpush.bf16.xpose.msra.mxu0 0
        %644 = vmatpush.bf16.xpose.msra.mxu0 0
        %645 = vmatpush.bf16.xpose.msra.mxu0 %v636
        %646 = vmatmul.bf16.gmra.mxu0 %v633
        %v647 = vpop.f32.mrf.mxu0
        %v648 = vadd.f32 0.0, %v647
        %v649 = vpop.f32.mrf.mxu0
        %650 = vdwg.mxu0
        %v651 = vsel %vm561, -1e+30, %v648
        %v652 = vsel %vm564, %v651, -inf
        %653 = vmax.xlane.f32.xlu0 %v652
        %v654 = vpop.xlane.xlu0 %653
        %v655 = vsub.f32 %v651, %v654
        %v656 = vmul.f32 %v655, 1.442695
        %v657 = vpow.pop %v656
        %v658 = vsel %vm564, %v657, 0.0
        %659 = vadd.xlane.f32.xlu0 %v658
        %v660 = vpop.xlane.xlu0 %659
        %v661 = vrcp.pop %v660
        %v662 = vmul.f32 %v657, %v661
        %v663 = vpack.c.bf16 %v662, %v662
        %v665 = vunpack.c.l.b16 %v621
        %v666 = vpack.c.b16 %v665, %v665
        %667 = vrot.lane.b32.xlu0 %v666, 120
        %v668 = vpop.permute.xlu0 %667
        %v670 = vsel %vm564, %v663, 0
        %v673 = vsel %vm600, %v668, 0
        %675 = vmatpush.bf16.msra.mxu0 0
        %676 = vmatpush.bf16.msra.mxu0 0
        %677 = vmatpush.bf16.msra.mxu0 0
        %678 = vmatpush.bf16.msra.mxu0 0
        %679 = vmatpush.bf16.msra.mxu0 0
        %680 = vmatpush.bf16.msra.mxu0 0
        %681 = vmatpush.bf16.msra.mxu0 0
        %682 = vmatpush.bf16.msra.mxu0 %v673
        %683 = vmatmul.bf16.gmra.mxu0 %v670
        %v684 = vpop.f32.mrf.mxu0
        %v685 = vadd.f32 0.0, %v684
        %v686 = vpop.f32.mrf.mxu0
        %687 = vdwg.mxu0
        %v688 = vpack.c.bf16 %v685, %v685
        %690 = vrot.lane.b32.xlu0 %v688, 8
        %v691 = vpop.permute.xlu0 %690
        %vm693 = vcmask 126016
        %694 = vst.msk [vmem:[#allocation4] sm:$0xf] %vm693, %v691
        %v695 = vld [vmem:[#allocation2] sm:$0xf]
        %v696 = vld [vmem:[#allocation3] sm:$0xf]
        %697 = vrot.lane.b32.xlu0 %v624, 112
        %v698 = vpop.permute.xlu0 %697
        %v700 = vunpack.c.l.b16 %v695
        %v701 = vpack.c.b16 %v700, %v700
        %702 = vrot.lane.b32.xlu0 %v701, 112
        %v703 = vpop.permute.xlu0 %702
        %v705 = vsel %vm564, %v698, 0
        %v708 = vsel %vm564, %v703, 0
        %710 = vmatpush.bf16.xpose.msra.mxu0 0
        %711 = vmatpush.bf16.xpose.msra.mxu0 0
        %712 = vmatpush.bf16.xpose.msra.mxu0 0
        %713 = vmatpush.bf16.xpose.msra.mxu0 0
        %714 = vmatpush.bf16.xpose.msra.mxu0 0
        %715 = vmatpush.bf16.xpose.msra.mxu0 0
        %716 = vmatpush.bf16.xpose.msra.mxu0 0
        %717 = vmatpush.bf16.xpose.msra.mxu0 %v708
        %718 = vmatmul.bf16.gmra.mxu0 %v705
        %v719 = vpop.f32.mrf.mxu0
        %v720 = vadd.f32 0.0, %v719
        %v721 = vpop.f32.mrf.mxu0
        %722 = vdwg.mxu0
        %v723 = vsel %vm561, -1e+30, %v720
        %v724 = vsel %vm564, %v723, -inf
        %725 = vmax.xlane.f32.xlu0 %v724
        %v726 = vpop.xlane.xlu0 %725
        %v727 = vsub.f32 %v723, %v726
        %v728 = vmul.f32 %v727, 1.442695
        %v729 = vpow.pop %v728
        %v730 = vsel %vm564, %v729, 0.0
        %731 = vadd.xlane.f32.xlu0 %v730
        %v732 = vpop.xlane.xlu0 %731
        %v733 = vrcp.pop %v732
        %v734 = vmul.f32 %v729, %v733
        %v735 = vpack.c.bf16 %v734, %v734
        %v737 = vunpack.c.l.b16 %v696
        %v738 = vpack.c.b16 %v737, %v737
        %739 = vrot.lane.b32.xlu0 %v738, 112
        %v740 = vpop.permute.xlu0 %739
        %v742 = vsel %vm564, %v735, 0
        %v745 = vsel %vm600, %v740, 0
        %747 = vmatpush.bf16.msra.mxu0 0
        %748 = vmatpush.bf16.msra.mxu0 0
        %749 = vmatpush.bf16.msra.mxu0 0
        %750 = vmatpush.bf16.msra.mxu0 0
        %751 = vmatpush.bf16.msra.mxu0 0
        %752 = vmatpush.bf16.msra.mxu0 0
        %753 = vmatpush.bf16.msra.mxu0 0
        %754 = vmatpush.bf16.msra.mxu0 %v745
        %755 = vmatmul.bf16.gmra.mxu0 %v742
        %v756 = vpop.f32.mrf.mxu0
        %v757 = vadd.f32 0.0, %v756
        %v758 = vpop.f32.mrf.mxu0
        %759 = vdwg.mxu0
        %v760 = vpack.c.bf16 %v757, %v757
        %762 = vrot.lane.b32.xlu0 %v760, 16
        %v763 = vpop.permute.xlu0 %762
        %vm765 = vcmask 191616
        %766 = vst.msk [vmem:[#allocation4] sm:$0xf] %vm765, %v763
        %v767 = vld [vmem:[#allocation2] sm:$0xf]
        %v768 = vld [vmem:[#allocation3] sm:$0xf]
        %769 = vrot.lane.b32.xlu0 %v624, 104
        %v770 = vpop.permute.xlu0 %769
        %v772 = vunpack.c.l.b16 %v767
        %v773 = vpack.c.b16 %v772, %v772
        %774 = vrot.lane.b32.xlu0 %v773, 104
        %v775 = vpop.permute.xlu0 %774
        %v777 = vsel %vm564, %v770, 0
        %v780 = vsel %vm564, %v775, 0
        %782 = vmatpush.bf16.xpose.msra.mxu0 0
        %783 = vmatpush.bf16.xpose.msra.mxu0 0
        %784 = vmatpush.bf16.xpose.msra.mxu0 0
        %785 = vmatpush.bf16.xpose.msra.mxu0 0
        %786 = vmatpush.bf16.xpose.msra.mxu0 0
        %787 = vmatpush.bf16.xpose.msra.mxu0 0
        %788 = vmatpush.bf16.xpose.msra.mxu0 0
        %789 = vmatpush.bf16.xpose.msra.mxu0 %v780
        %790 = vmatmul.bf16.gmra.mxu0 %v777
        %v791 = vpop.f32.mrf.mxu0
        %v792 = vadd.f32 0.0, %v791
        %v793 = vpop.f32.mrf.mxu0
        %794 = vdwg.mxu0
        %v795 = vsel %vm561, -1e+30, %v792
        %v796 = vsel %vm564, %v795, -inf
        %797 = vmax.xlane.f32.xlu0 %v796
        %v798 = vpop.xlane.xlu0 %797
        %v799 = vsub.f32 %v795, %v798
        %v800 = vmul.f32 %v799, 1.442695
        %v801 = vpow.pop %v800
        %v802 = vsel %vm564, %v801, 0.0
        %803 = vadd.xlane.f32.xlu0 %v802
        %v804 = vpop.xlane.xlu0 %803
        %v805 = vrcp.pop %v804
        %v806 = vmul.f32 %v801, %v805
        %v807 = vpack.c.bf16 %v806, %v806
        %v809 = vunpack.c.l.b16 %v768
        %v810 = vpack.c.b16 %v809, %v809
        %811 = vrot.lane.b32.xlu0 %v810, 104
        %v812 = vpop.permute.xlu0 %811
        %v814 = vsel %vm564, %v807, 0
        %v817 = vsel %vm600, %v812, 0
        %819 = vmatpush.bf16.msra.mxu0 0
        %820 = vmatpush.bf16.msra.mxu0 0
        %821 = vmatpush.bf16.msra.mxu0 0
        %822 = vmatpush.bf16.msra.mxu0 0
        %823 = vmatpush.bf16.msra.mxu0 0
        %824 = vmatpush.bf16.msra.mxu0 0
        %825 = vmatpush.bf16.msra.mxu0 0
        %826 = vmatpush.bf16.msra.mxu0 %v817
        %827 = vmatmul.bf16.gmra.mxu0 %v814
        %v828 = vpop.f32.mrf.mxu0
        %v829 = vadd.f32 0.0, %v828
        %v830 = vpop.f32.mrf.mxu0
        %831 = vdwg.mxu0
        %v832 = vpack.c.bf16 %v829, %v829
        %834 = vrot.lane.b32.xlu0 %v832, 24
        %v835 = vpop.permute.xlu0 %834
        %vm837 = vcmask 257216
        %838 = vst.msk [vmem:[#allocation4] sm:$0xf] %vm837, %v835
        %v839 = vld [vmem:[#allocation4] sm:$0xf]
        %v840 = vld [vmem:[#allocation13] sm:$0xf]
        %v841 = vld [vmem:[#allocation13 + $0x4] sm:$0xf]
        %v842 = vld [vmem:[#allocation13 + $0x8] sm:$0xf]
        %v843 = vld [vmem:[#allocation13 + $0xc] sm:$0xf]
        %v844 = vld [vmem:[%s8] sm:$0x1]
        %v846 = vperm.slane %v844, 0
        %v852 = vunpack.c.l.b16 %v840
        %v853 = vunpack.c.l.b16 %v841
        %v854 = vunpack.c.l.b16 %v842
        %v855 = vunpack.c.l.b16 %v843
        %v856 = vpack.c.b16 %v853, %v852
        %v857 = vpack.c.b16 %v855, %v854
        %v861 = vsel %vm537, %v839, 0
        %863 = vmatpush.bf16.msra.mxu0 0
        %864 = vmatpush.bf16.msra.mxu0 0
        %865 = vmatpush.bf16.msra.mxu0 0
        %866 = vmatpush.bf16.msra.mxu0 0
        %867 = vmatpush.bf16.msra.mxu0 0
        %868 = vmatpush.bf16.msra.mxu0 0
        %869 = vmatpush.bf16.msra.mxu0 %v857
        %870 = vmatpush.bf16.msra.mxu0 %v856
        %871 = vmatmul.bf16.gmra.mxu0 %v861
        %v872 = vpop.f32.mrf.mxu0
        %v873 = vadd.f32 %v846, %v872
        %v874 = vpop.f32.mrf.mxu0
        %875 = vdwg.mxu0
        %876 = vst.msk [vmem:[%s429] sm:$0xff] %vm537, %v873
        %s877 = sand.u32 %s244, 1
        %s878 = scalar_lea.sflag [#allocation7], %s877
        %s879 = sand.u32 %s244, 1
        %s880 = smul.addr %s879, 8
        %s881 = scalar_lea.vmem [#allocation14], %s880
        // Predicated region
        $region81: #{tpu_custom_call.1} parent=55 // pred_check
          %p882 = pneg %p254
        $region82: #{tpu_custom_call.1} parent=55 // pred_check_branch
          %884 = sbr.rel (%p882) target = $region84
        $region83: #{tpu_custom_call.1} parent=55 // pred_region
          %886 = vsyncadd %s878, 0
          %s887 = sadd.s32 %s33, %s32
          %s888 = smul.addr %s887, 8
          %s889 = scalar_lea.hbm %s9, %s888
          %s891 = sshll.u32 %s881, 4
          %s892 = int_to_ptr.vmem [resolvable:$true] %s891
          %s893 = sshll.u32 %s889, 4
          %s894 = int_to_ptr.hbm [resolvable:$true] %s893
          %896 = dma.vmem_to_hbm [thread:$0]  %s892, 128, %s894, %s878
        $region84: #{tpu_custom_call.1} parent=55 // pred_fallthru
          _
      $region56: #{tpu_custom_call.1} parent=5 // pred_fallthru
        _
      %p897 = scmp.le.s32.totalorder 2, %s23
      // Predicated region
      $region85: #{tpu_custom_call.1} parent=5 // pred_check
        %p898 = pneg %p897
      $region86: #{tpu_custom_call.1} parent=5 // pred_check_branch
        %900 = sbr.rel (%p898) target = $region88
      $region87: #{tpu_custom_call.1} parent=5 // pred_region
        %s901 = ssub.s32 %s23, 2
        // Predicated region
        $region89: #{tpu_custom_call.1} parent=87 // pred_check
          %p902 = pneg %p260
        $region90: #{tpu_custom_call.1} parent=87 // pred_check_branch
          %904 = sbr.rel (%p902) target = $region92
        $region91: #{tpu_custom_call.1} parent=87 // pred_region
          %s905 = sand.u32 %s245, 1
          %s906 = scalar_lea.sflag [#allocation7], %s905
          %s907 = sand.u32 %s245, 1
          %s908 = smul.addr %s907, 8
          %s909 = scalar_lea.vmem [#allocation14], %s908
          %911 = dma.done %s906, 128
        $region92: #{tpu_custom_call.1} parent=87 // pred_fallthru
          _
      $region88: #{tpu_custom_call.1} parent=5 // pred_fallthru
        _
    $region6: #{tpu_custom_call.1} parent=1 // loop_footer
      %s27 = sadd.s32 1, %s23
    $region7: #{tpu_custom_call.1} parent=1 // loop_footer_branch
      %22 = sbr.rel target = $region3
    $region8: #{tpu_custom_call.1} parent=1 // loop_exit
      _
    %912 = vsyncpa [#allocation6], 1
    %s913 = scalar_lea.sflag [#allocation6], 1
    %914 = vsyncpa %s913, 1
    %915 = vsyncpa [#allocation9], 1
    %916 = vsyncpa [#allocation12], 1
    %917 = vsyncpa [#allocation7], 1
    %s918 = scalar_lea.sflag [#allocation7], 1
    %919 = vsyncpa %s918, 1

</llo_original>
